<compile_context>
chip_gen: v7x
topology: tpu7x:2x2x1
jax: 0.10.0
libtpu: 0.0.40
codegen_flags: <defaults>
</compile_context>

<pallas_src>
import functools

import numpy as np
import jax
import jax.numpy as jnp
from jax.experimental import pallas as pl
from jax.experimental.pallas import tpu as pltpu


def _round_up(x, m):
    return ((x + m - 1) // m) * m


# ---------------------------------------------------------------------------
# Fused kernel: 3 narrow matmuls -> Izhikevich update (state in VMEM scratch
# across the time axis) -> roll+mask lane-dense spike slab.
# ---------------------------------------------------------------------------
def _bgnet_kernel(x1_ref, x2_ref, x3_ref, w1_ref, w2_ref, w3_ref, p_ref,
                  mem_in_ref, u_in_ref,
                  spk_ref, mem_out_ref, u_out_ref,
                  mem_sc, u_sc,
                  *, d0, d_bg, d_pad, dt):
    t = pl.program_id(1)

    # State enters VMEM once per batch tile and stays resident over time.
    @pl.when(t == 0)
    def _():
        mem_sc[...] = mem_in_ref[...]
        u_sc[...] = u_in_ref[...]

    # Synaptic currents: three narrow MXU dots; each weight already sits at
    # its population's lane offset in the 128-wide slab (zero elsewhere).
    cur = jnp.dot(x1_ref[0], w1_ref[...], preferred_element_type=jnp.float32)
    cur = cur + jnp.dot(x2_ref[0], w2_ref[...],
                        preferred_element_type=jnp.float32)
    cur = cur + jnp.dot(x3_ref[0], w3_ref[...],
                        preferred_element_type=jnp.float32)

    # Fused per-lane constants (rows of the packed (8, d_pad) table).
    ab_dt = p_ref[0:1, :]   # dt * a * b
    a_dt = p_ref[1:2, :]    # dt * a
    c = p_ref[2:3, :]
    d = p_ref[3:4, :]
    thr = p_ref[4:5, :]

    mem0 = mem_sc[...]
    u0 = u_sc[...]

    # Izhikevich integration (Horner form for the quadratic).
    mem = mem0 + dt * (mem0 * (0.04 * mem0 + 5.0) + 140.0 - u0) + cur
    u = u0 + ab_dt * mem - a_dt * u0

    spk_bool = mem > thr
    spike = spk_bool.astype(jnp.float32)
    mem_sc[...] = jnp.where(spk_bool, c, mem)
    u_sc[...] = jnp.where(spk_bool, u + d, u)

    # Epilogue: lane-dense output slab without unaligned slices / concat.
    #   lanes [0, d0)        -> DLPFC spikes
    #   lanes [d0, d0+d_bg)  -> StrD1 + StrD2 spikes (BG_out)
    #   remaining lanes      -> 0
    # One XLU roll brings the StrD2 lanes on top of the StrD1 lanes; two VPU
    # selects produce the slab entirely in registers.
    lane = jax.lax.broadcasted_iota(jnp.int32, spike.shape, 1)
    rolled = pltpu.roll(spike, shift=d_pad - d_bg, axis=1)
    spk_ref[0] = jnp.where(lane < d0, spike,
                           jnp.where(lane < d0 + d_bg, spike + rolled, 0.0))

    # Final state leaves VMEM only once per batch tile.
    @pl.when(t == pl.num_programs(1) - 1)
    def _():
        mem_out_ref[...] = mem_sc[...]
        u_out_ref[...] = u_sc[...]


def _make_forward_fn(batch, b_pad, tb, d_ins, d_pad, d0, d_bg, dt):
    kernel = functools.partial(_bgnet_kernel, d0=d0, d_bg=d_bg, d_pad=d_pad,
                               dt=dt)
    n_bt = b_pad // tb

    def _call(T, x1, x2, x3, w1, w2, w3, params, mem, u):
        x_specs = [pl.BlockSpec((1, tb, din), lambda b, t: (t, b, 0))
                   for din in d_ins]
        w_specs = [pl.BlockSpec((din, d_pad), lambda b, t: (0, 0))
                   for din in d_ins]
        state_spec = pl.BlockSpec((tb, d_pad), lambda b, t: (b, 0))
        return pl.pallas_call(
            kernel,
            out_shape=(
                jax.ShapeDtypeStruct((T, b_pad, d_pad), jnp.float32),  # spikes
                jax.ShapeDtypeStruct((b_pad, d_pad), jnp.float32),     # mem'
                jax.ShapeDtypeStruct((b_pad, d_pad), jnp.float32),     # u'
            ),
            grid=(n_bt, T),
            in_specs=x_specs + w_specs + [
                pl.BlockSpec((8, d_pad), lambda b, t: (0, 0)),   # params
                state_spec,                                      # mem in
                state_spec,                                      # u in
            ],
            out_specs=(
                pl.BlockSpec((1, tb, d_pad), lambda b, t: (t, b, 0)),
                state_spec,
                state_spec,
            ),
            scratch_shapes=[pltpu.VMEM((tb, d_pad), jnp.float32),
                            pltpu.VMEM((tb, d_pad), jnp.float32)],
            # In-place state update: mem -> new mem, u -> new u.
            input_output_aliases={7: 1, 8: 2},
            compiler_params=pltpu.CompilerParams(
                dimension_semantics=("parallel", "arbitrary")),
        )(x1, x2, x3, w1, w2, w3, params, mem, u)

    @functools.partial(jax.jit, donate_argnums=(7, 8))
    def fwd(x1, x2, x3, w1, w2, w3, params, mem, u):
        def prep(x):
            x = jnp.asarray(x, jnp.float32)
            if x.ndim == 2:              # single step -> add time axis
                x = x[None]
            if x.shape[1] != b_pad:      # only if batch needed 8-alignment
                x = jnp.pad(x, ((0, 0), (0, b_pad - x.shape[1]), (0, 0)))
            return x

        x1, x2, x3 = prep(x1), prep(x2), prep(x3)
        T = x1.shape[0]
        out, new_mem, new_u = _call(T, x1, x2, x3, w1, w2, w3, params, mem, u)
        dlpfc = out[:, :batch, :d0]
        bg = out[:, :batch, d0:d0 + d_bg]
        return dlpfc, bg, new_mem, new_u

    return fwd


class BGNetPallas:
    """Functional JAX/Pallas port of BGNet (single fused, time-looped kernel).

    node[0] = DLPFC : Izh(a=0.02, b=0.6,  c=-65, d=8, thr=30, mem0=-70)
    node[1] = StrD1 : Izh(a=0.01, b=0.01, c=-65, d=8, thr=30, mem0=-70)
    node[2] = StrD2 : Izh(a=0.1,  b=0.5,  c=-65, d=8, thr=30, mem0=-70)
    """

    _NODE_PARAMS = (
        dict(a=0.02, b=0.6, c=-65.0, d=8.0, threshold=30.0),
        dict(a=0.01, b=0.01, c=-65.0, d=8.0, threshold=30.0),
        dict(a=0.1, b=0.5, c=-65.0, d=8.0, threshold=30.0),
    )
    _MEM0 = -70.0

    def __init__(self, weights, batch, dt=1.0):
        # weights: list of 3 arrays, each [in_features, out_features]
        weights = [np.asarray(w, np.float32) for w in weights]
        assert len(weights) == 3
        assert weights[1].shape[1] == weights[2].shape[1], \
            "BG_out requires StrD1 and StrD2 to have the same output size"
        self.batch = batch
        self.dt = float(dt)

        d_ins = [w.shape[0] for w in weights]
        d_outs = [w.shape[1] for w in weights]
        self.d_outs = d_outs
        d0, d_bg = d_outs[0], d_outs[1]
        self._d_tot = d0 + 2 * d_bg
        self.d_pad = _round_up(self._d_tot, 128)

        # Batch tiling: a block batch dim must be a multiple of 8 or equal the
        # full batch; small batches get one exact tile (no padding at all).
        b8 = _round_up(batch, 8) if batch > 8 else batch
        TB_MAX = 512   # big tiles amortize per-grid-step overhead; ~3 MiB VMEM
        if b8 <= TB_MAX:
            self.tb, self.b_pad = b8, b8
        else:
            self.tb = TB_MAX
            self.b_pad = _round_up(b8, self.tb)

        # Per-population weights placed at their lane offset of the 128-wide
        # output slab (three narrow dots replace the wrapper-side x concat).
        col_off = (0, d0, d0 + d_bg)
        self.w_pops = []
        for w, off in zip(weights, col_off):
            w_np = np.zeros((w.shape[0], self.d_pad), np.float32)
            w_np[:, off:off + w.shape[1]] = w
            self.w_pops.append(jnp.asarray(w_np))

        # Packed per-lane constants: rows [dt*a*b, dt*a, c, d, thr].
        # Padding lanes: thr=0, c=0 -> they spike & reset every step (bounded
        # state forever) and are masked out of the output slab.
        p_np = np.zeros((8, self.d_pad), np.float32)
        b_col = np.zeros((self.d_pad,), np.float32)
        col = 0
        for d_out, prm in zip(d_outs, self._NODE_PARAMS):
            sl = slice(col, col + d_out)
            p_np[0, sl] = self.dt * prm["a"] * prm["b"]
            p_np[1, sl] = self.dt * prm["a"]
            p_np[2, sl] = prm["c"]
            p_np[3, sl] = prm["d"]
            p_np[4, sl] = prm["threshold"]
            b_col[sl] = prm["b"]
            col += d_out
        self.params = jnp.asarray(p_np)
        self._b_col = b_col

        self._fwd = _make_forward_fn(batch, self.b_pad, self.tb, d_ins,
                                     self.d_pad, d0, d_bg, self.dt)
        self._init_state()

    def _init_state(self):
        mem0 = np.zeros((self.b_pad, self.d_pad), np.float32)
        mem0[:, :self._d_tot] = np.float32(self._MEM0)
        u0 = np.broadcast_to(self._b_col * np.float32(self._MEM0),
                             (self.b_pad, self.d_pad)).copy()
        self.mem = jnp.asarray(mem0)
        self.u = jnp.asarray(u0)

    def forward(self, input1, input2, input3):
        """Single Izhikevich step (matches the original module's forward)."""
        dlpfc, bg, self.mem, self.u = self._fwd(
            input1, input2, input3, *self.w_pops, self.params,
            self.mem, self.u)
        return dlpfc[0], bg[0]

    def forward_seq(self, seq1, seq2, seq3):
        """T steps in ONE pallas_call (inputs shaped [T, batch, d_in])."""
        dlpfc, bg, self.mem, self.u = self._fwd(
            seq1, seq2, seq3, *self.w_pops, self.params, self.mem, self.u)
        return dlpfc, bg

    def reset(self):
        self._init_state()


if __name__ == "__main__":
    batch = 2
    d_in = 16
    d_out = 32

    key = jax.random.PRNGKey(0)
    k = jax.random.split(key, 6)

    # Round test data to bf16-exact values so the kernel's MXU matmul and the
    # pure-JAX reference matmul agree exactly near the spike threshold.
    def bf16_exact(x):
        return x.astype(jnp.bfloat16).astype(jnp.float32)

    w_dlpfc = bf16_exact(0.5 * jax.random.normal(k[0], (d_in, d_out)))
    w_strd1 = bf16_exact(0.5 * jax.random.normal(k[1], (d_in, d_out)))
    w_strd2 = bf16_exact(0.5 * jax.random.normal(k[2], (d_in, d_out)))

    input1 = bf16_exact(40.0 * jax.random.uniform(k[3], (batch, d_in)))
    input2 = bf16_exact(40.0 * jax.random.uniform(k[4], (batch, d_in)))
    input3 = bf16_exact(40.0 * jax.random.uniform(k[5], (batch, d_in)))

    net = BGNetPallas([w_dlpfc, w_strd1, w_strd2], batch=batch)

    dlpfc_out, bg_out = net.forward(input1, input2, input3)
    jax.block_until_ready((dlpfc_out, bg_out))

    # Pure-JAX reference of the same dynamics (same op ordering).
    def ref_step(x, w, prm, mem, u, dt=1.0):
        cur = x @ w
        mem_n = mem + dt * (mem * (0.04 * mem + 5.0) + 140.0 - u) + cur
        u_n = u + dt * prm["a"] * prm["b"] * mem_n - dt * prm["a"] * u
        spk = (mem_n > prm["threshold"]).astype(jnp.float32)
        mem_o = jnp.where(spk > 0, prm["c"], mem_n)
        u_o = jnp.where(spk > 0, u_n + prm["d"], u_n)
        return spk, mem_o, u_o

    prms = BGNetPallas._NODE_PARAMS
    ws = (w_dlpfc, w_strd1, w_strd2)
    xs = (input1, input2, input3)

    mems = [jnp.full((batch, d_out), -70.0, jnp.float32) for _ in range(3)]
    us = [prms[i]["b"] * mems[i] for i in range(3)]
    spks = []
    for i in range(3):
        s, mems[i], us[i] = ref_step(xs[i], ws[i], prms[i], mems[i], us[i])
        spks.append(s)
    ref_dlpfc, ref_bg = spks[0], spks[1] + spks[2]

    assert dlpfc_out.shape == (batch, d_out) and bg_out.shape == (batch, d_out)
    assert jnp.allclose(dlpfc_out, ref_dlpfc, atol=1e-5)
    assert jnp.allclose(bg_out, ref_bg, atol=1e-5)

    # Multi-step check: the time loop runs inside the kernel (mem/u never
    # leave VMEM between steps); spikes for all T steps from one pallas_call.
    net.reset()
    T = 4
    ks = jax.random.split(jax.random.PRNGKey(1), 3)
    seqs = [bf16_exact(40.0 * jax.random.uniform(ks[i], (T, batch, d_in)))
            for i in range(3)]
    dlpfc_seq, bg_seq = net.forward_seq(*seqs)
    jax.block_until_ready((dlpfc_seq, bg_seq))

    mems = [jnp.full((batch, d_out), -70.0, jnp.float32) for _ in range(3)]
    us = [prms[i]["b"] * mems[i] for i in range(3)]
    ref_d, ref_b = [], []
    for t in range(T):
        spks = []
        for i in range(3):
            s, mems[i], us[i] = ref_step(seqs[i][t], ws[i], prms[i],
                                         mems[i], us[i])
            spks.append(s)
        ref_d.append(spks[0])
        ref_b.append(spks[1] + spks[2])
    ref_d = jnp.stack(ref_d)
    ref_b = jnp.stack(ref_b)

    assert dlpfc_seq.shape == (T, batch, d_out)
    assert bg_seq.shape == (T, batch, d_out)
    assert jnp.allclose(dlpfc_seq, ref_d, atol=1e-4)
    assert jnp.allclose(bg_seq, ref_b, atol=1e-4)

    print("KERNEL_OK")
</pallas_src>

<mosaic_0001>
module attributes {stable_mosaic.version = 11 : i64} {
  func.func @_bgnet_kernel(%arg0: i32, %arg1: i32, %arg2: memref<1x2x16xf32, #tpu.memory_space<vmem>>, %arg3: memref<1x2x16xf32, #tpu.memory_space<vmem>>, %arg4: memref<1x2x16xf32, #tpu.memory_space<vmem>>, %arg5: memref<16x128xf32, #tpu.memory_space<vmem>>, %arg6: memref<16x128xf32, #tpu.memory_space<vmem>>, %arg7: memref<16x128xf32, #tpu.memory_space<vmem>>, %arg8: memref<8x128xf32, #tpu.memory_space<vmem>>, %arg9: memref<2x128xf32, #tpu.memory_space<vmem>>, %arg10: memref<2x128xf32, #tpu.memory_space<vmem>>, %arg11: memref<1x2x128xf32, #tpu.memory_space<vmem>>, %arg12: memref<2x128xf32, #tpu.memory_space<vmem>>, %arg13: memref<2x128xf32, #tpu.memory_space<vmem>>, %arg14: memref<2x128xf32, #tpu.memory_space<vmem>>, %arg15: memref<2x128xf32, #tpu.memory_space<vmem>>) attributes {dimension_semantics = [#tpu.dimension_semantics<parallel>, #tpu.dimension_semantics<arbitrary>], iteration_bounds = array<i64: 1, 1>, scalar_prefetch = 0 : i64, scratch_operands = 2 : i64, tpu.core_type = #tpu.core_type<tc>, window_params = [{transform_indices = @transform_0, window_bounds = array<i64: 1, 2, 16>}, {transform_indices = @transform_1, window_bounds = array<i64: 1, 2, 16>}, {transform_indices = @transform_2, window_bounds = array<i64: 1, 2, 16>}, {pipeline_mode = #tpu.pipeline_mode<synchronous>, transform_indices = @transform_3, window_bounds = array<i64: 16, 128>}, {pipeline_mode = #tpu.pipeline_mode<synchronous>, transform_indices = @transform_4, window_bounds = array<i64: 16, 128>}, {pipeline_mode = #tpu.pipeline_mode<synchronous>, transform_indices = @transform_5, window_bounds = array<i64: 16, 128>}, {pipeline_mode = #tpu.pipeline_mode<synchronous>, transform_indices = @transform_6, window_bounds = array<i64: 8, 128>}, {transform_indices = @transform_7, window_bounds = array<i64: 2, 128>}, {transform_indices = @transform_8, window_bounds = array<i64: 2, 128>}, {transform_indices = @transform_9, window_bounds = array<i64: 1, 2, 128>}, {transform_indices = @transform_10, window_bounds = array<i64: 2, 128>}, {transform_indices = @transform_11, window_bounds = array<i64: 2, 128>}]} {
    %c0_i32 = arith.constant 0 : i32
    %0 = arith.cmpi eq, %arg1, %c0_i32 : i32
    %1 = arith.extui %0 : i1 to i32
    %c0_i32_0 = arith.constant 0 : i32
    %2 = arith.cmpi ne, %1, %c0_i32_0 : i32
    scf.if %2 {
      %c0_41 = arith.constant 0 : index
      %c0_42 = arith.constant 0 : index
      %70 = vector.load %arg9[%c0_41, %c0_42] : memref<2x128xf32, #tpu.memory_space<vmem>>, vector<2x128xf32>
      %c0_43 = arith.constant 0 : index
      %c0_44 = arith.constant 0 : index
      %71 = vector.load %arg14[%c0_43, %c0_44] : memref<2x128xf32, #tpu.memory_space<vmem>>, vector<2x128xf32>
      tpu.vector_store %arg14[%c0_43, %c0_44], %70 {strides = array<i32>} : memref<2x128xf32, #tpu.memory_space<vmem>>, vector<2x128xf32>,
      %c0_45 = arith.constant 0 : index
      %c0_46 = arith.constant 0 : index
      %72 = vector.load %arg10[%c0_45, %c0_46] : memref<2x128xf32, #tpu.memory_space<vmem>>, vector<2x128xf32>
      %c0_47 = arith.constant 0 : index
      %c0_48 = arith.constant 0 : index
      %73 = vector.load %arg15[%c0_47, %c0_48] : memref<2x128xf32, #tpu.memory_space<vmem>>, vector<2x128xf32>
      tpu.vector_store %arg15[%c0_47, %c0_48], %72 {strides = array<i32>} : memref<2x128xf32, #tpu.memory_space<vmem>>, vector<2x128xf32>,
    } else {
    }
    %c0 = arith.constant 0 : index
    %c0_1 = arith.constant 0 : index
    %c0_2 = arith.constant 0 : index
    %3 = vector.load %arg2[%c0, %c0_1, %c0_2] : memref<1x2x16xf32, #tpu.memory_space<vmem>>, vector<1x2x16xf32>
    %4 = vector.shape_cast %3 : vector<1x2x16xf32> to vector<2x16xf32>
    %c0_3 = arith.constant 0 : index
    %c0_4 = arith.constant 0 : index
    %5 = vector.load %arg5[%c0_3, %c0_4] : memref<16x128xf32, #tpu.memory_space<vmem>>, vector<16x128xf32>
    %cst = arith.constant dense<0.000000e+00> : vector<2x128xf32>
    %6 = tpu.matmul %4, %5, %cst {dimension_numbers = #tpu.dot_dimension_numbers<[1], [0], [0], [1], [0, 0, 1, 1], [], []>} : vector<2x16xf32>, vector<16x128xf32>, vector<2x128xf32> -> vector<2x128xf32>
    %c0_5 = arith.constant 0 : index
    %c0_6 = arith.constant 0 : index
    %c0_7 = arith.constant 0 : index
    %7 = vector.load %arg3[%c0_5, %c0_6, %c0_7] : memref<1x2x16xf32, #tpu.memory_space<vmem>>, vector<1x2x16xf32>
    %8 = vector.shape_cast %7 : vector<1x2x16xf32> to vector<2x16xf32>
    %c0_8 = arith.constant 0 : index
    %c0_9 = arith.constant 0 : index
    %9 = vector.load %arg6[%c0_8, %c0_9] : memref<16x128xf32, #tpu.memory_space<vmem>>, vector<16x128xf32>
    %cst_10 = arith.constant dense<0.000000e+00> : vector<2x128xf32>
    %10 = tpu.matmul %8, %9, %cst_10 {dimension_numbers = #tpu.dot_dimension_numbers<[1], [0], [0], [1], [0, 0, 1, 1], [], []>} : vector<2x16xf32>, vector<16x128xf32>, vector<2x128xf32> -> vector<2x128xf32>
    %11 = arith.addf %6, %10 : vector<2x128xf32>
    %c0_11 = arith.constant 0 : index
    %c0_12 = arith.constant 0 : index
    %c0_13 = arith.constant 0 : index
    %12 = vector.load %arg4[%c0_11, %c0_12, %c0_13] : memref<1x2x16xf32, #tpu.memory_space<vmem>>, vector<1x2x16xf32>
    %13 = vector.shape_cast %12 : vector<1x2x16xf32> to vector<2x16xf32>
    %c0_14 = arith.constant 0 : index
    %c0_15 = arith.constant 0 : index
    %14 = vector.load %arg7[%c0_14, %c0_15] : memref<16x128xf32, #tpu.memory_space<vmem>>, vector<16x128xf32>
    %cst_16 = arith.constant dense<0.000000e+00> : vector<2x128xf32>
    %15 = tpu.matmul %13, %14, %cst_16 {dimension_numbers = #tpu.dot_dimension_numbers<[1], [0], [0], [1], [0, 0, 1, 1], [], []>} : vector<2x16xf32>, vector<16x128xf32>, vector<2x128xf32> -> vector<2x128xf32>
    %16 = arith.addf %11, %15 : vector<2x128xf32>
    %c0_17 = arith.constant 0 : index
    %c0_18 = arith.constant 0 : index
    %17 = vector.load %arg8[%c0_17, %c0_18] : memref<8x128xf32, #tpu.memory_space<vmem>>, vector<1x128xf32>
    %c1 = arith.constant 1 : index
    %c0_19 = arith.constant 0 : index
    %18 = vector.load %arg8[%c1, %c0_19] : memref<8x128xf32, #tpu.memory_space<vmem>>, vector<1x128xf32>
    %c2 = arith.constant 2 : index
    %c0_20 = arith.constant 0 : index
    %19 = vector.load %arg8[%c2, %c0_20] : memref<8x128xf32, #tpu.memory_space<vmem>>, vector<1x128xf32>
    %c3 = arith.constant 3 : index
    %c0_21 = arith.constant 0 : index
    %20 = vector.load %arg8[%c3, %c0_21] : memref<8x128xf32, #tpu.memory_space<vmem>>, vector<1x128xf32>
    %c4 = arith.constant 4 : index
    %c0_22 = arith.constant 0 : index
    %21 = vector.load %arg8[%c4, %c0_22] : memref<8x128xf32, #tpu.memory_space<vmem>>, vector<1x128xf32>
    %c0_23 = arith.constant 0 : index
    %c0_24 = arith.constant 0 : index
    %22 = vector.load %arg14[%c0_23, %c0_24] : memref<2x128xf32, #tpu.memory_space<vmem>>, vector<2x128xf32>
    %c0_25 = arith.constant 0 : index
    %c0_26 = arith.constant 0 : index
    %23 = vector.load %arg15[%c0_25, %c0_26] : memref<2x128xf32, #tpu.memory_space<vmem>>, vector<2x128xf32>
    %cst_27 = arith.constant 4.000000e-02 : f32
    %24 = vector.broadcast %cst_27 : f32 to vector<2x128xf32>
    %25 = arith.mulf %24, %22 : vector<2x128xf32>
    %cst_28 = arith.constant 5.000000e+00 : f32
    %26 = vector.broadcast %cst_28 : f32 to vector<2x128xf32>
    %27 = arith.addf %25, %26 : vector<2x128xf32>
    %28 = arith.mulf %22, %27 : vector<2x128xf32>
    %cst_29 = arith.constant 1.400000e+02 : f32
    %29 = vector.broadcast %cst_29 : f32 to vector<2x128xf32>
    %30 = arith.addf %28, %29 : vector<2x128xf32>
    %31 = arith.subf %30, %23 : vector<2x128xf32>
    %cst_30 = arith.constant 1.000000e+00 : f32
    %32 = vector.broadcast %cst_30 : f32 to vector<2x128xf32>
    %33 = arith.mulf %32, %31 : vector<2x128xf32>
    %34 = arith.addf %22, %33 : vector<2x128xf32>
    %35 = arith.addf %34, %16 : vector<2x128xf32>
    %36 = vector.broadcast %17 : vector<1x128xf32> to vector<2x128xf32>
    %37 = arith.mulf %36, %35 : vector<2x128xf32>
    %38 = arith.addf %23, %37 : vector<2x128xf32>
    %39 = vector.broadcast %18 : vector<1x128xf32> to vector<2x128xf32>
    %40 = arith.mulf %39, %23 : vector<2x128xf32>
    %41 = arith.subf %38, %40 : vector<2x128xf32>
    %42 = vector.broadcast %21 : vector<1x128xf32> to vector<2x128xf32>
    %43 = arith.cmpf ogt, %35, %42 : vector<2x128xf32>
    %44 = arith.extui %43 : vector<2x128xi1> to vector<2x128xi32>
    %45 = arith.sitofp %44 : vector<2x128xi32> to vector<2x128xf32>
    %46 = vector.shape_cast %19 : vector<1x128xf32> to vector<1x128xf32>
    %47 = vector.broadcast %46 : vector<1x128xf32> to vector<2x128xf32>
    %48 = arith.select %43, %47, %35 : vector<2x128xi1>, vector<2x128xf32>
    %c0_31 = arith.constant 0 : index
    %c0_32 = arith.constant 0 : index
    %49 = vector.load %arg14[%c0_31, %c0_32] : memref<2x128xf32, #tpu.memory_space<vmem>>, vector<2x128xf32>
    tpu.vector_store %arg14[%c0_31, %c0_32], %48 {strides = array<i32>} : memref<2x128xf32, #tpu.memory_space<vmem>>, vector<2x128xf32>,
    %50 = vector.broadcast %20 : vector<1x128xf32> to vector<2x128xf32>
    %51 = arith.addf %41, %50 : vector<2x128xf32>
    %52 = arith.select %43, %51, %41 : vector<2x128xi1>, vector<2x128xf32>
    %c0_33 = arith.constant 0 : index
    %c0_34 = arith.constant 0 : index
    %53 = vector.load %arg15[%c0_33, %c0_34] : memref<2x128xf32, #tpu.memory_space<vmem>>, vector<2x128xf32>
    tpu.vector_store %arg15[%c0_33, %c0_34], %52 {strides = array<i32>} : memref<2x128xf32, #tpu.memory_space<vmem>>, vector<2x128xf32>,
    %54 = tpu.iota {dimensions = array<i32: 1>} : vector<2x128xi32>
    %c96_i32 = arith.constant 96 : i32
    %55 = tpu.dynamic_rotate %45 by %c96_i32 dim 1 : vector<2x128xf32>, i32 -> vector<2x128xf32>
    %c32_i32 = arith.constant 32 : i32
    %56 = vector.broadcast %c32_i32 : i32 to vector<2x128xi32>
    %57 = arith.cmpi slt, %54, %56 : vector<2x128xi32>
    %c64_i32 = arith.constant 64 : i32
    %58 = vector.broadcast %c64_i32 : i32 to vector<2x128xi32>
    %59 = arith.cmpi slt, %54, %58 : vector<2x128xi32>
    %60 = arith.addf %45, %55 : vector<2x128xf32>
    %cst_35 = arith.constant 0.000000e+00 : f32
    %61 = vector.broadcast %cst_35 : f32 to vector<2x128xf32>
    %62 = arith.select %59, %60, %61 : vector<2x128xi1>, vector<2x128xf32>
    %63 = arith.select %57, %45, %62 : vector<2x128xi1>, vector<2x128xf32>
    %c0_36 = arith.constant 0 : index
    %c0_37 = arith.constant 0 : index
    %c0_38 = arith.constant 0 : index
    %64 = vector.load %arg11[%c0_36, %c0_37, %c0_38] : memref<1x2x128xf32, #tpu.memory_space<vmem>>, vector<1x2x128xf32>
    %65 = vector.shape_cast %64 : vector<1x2x128xf32> to vector<2x128xf32>
    %66 = vector.shape_cast %63 : vector<2x128xf32> to vector<1x2x128xf32>
    tpu.vector_store %arg11[%c0_36, %c0_37, %c0_38], %66 {strides = array<i32>} : memref<1x2x128xf32, #tpu.memory_space<vmem>>, vector<1x2x128xf32>,
    %c0_i32_39 = arith.constant 0 : i32
    %67 = arith.cmpi eq, %arg1, %c0_i32_39 : i32
    %68 = arith.extui %67 : i1 to i32
    %c0_i32_40 = arith.constant 0 : i32
    %69 = arith.cmpi ne, %68, %c0_i32_40 : i32
    scf.if %69 {
      %c0_41 = arith.constant 0 : index
      %c0_42 = arith.constant 0 : index
      %70 = vector.load %arg14[%c0_41, %c0_42] : memref<2x128xf32, #tpu.memory_space<vmem>>, vector<2x128xf32>
      %c0_43 = arith.constant 0 : index
      %c0_44 = arith.constant 0 : index
      %71 = vector.load %arg12[%c0_43, %c0_44] : memref<2x128xf32, #tpu.memory_space<vmem>>, vector<2x128xf32>
      tpu.vector_store %arg12[%c0_43, %c0_44], %70 {strides = array<i32>} : memref<2x128xf32, #tpu.memory_space<vmem>>, vector<2x128xf32>,
      %c0_45 = arith.constant 0 : index
      %c0_46 = arith.constant 0 : index
      %72 = vector.load %arg15[%c0_45, %c0_46] : memref<2x128xf32, #tpu.memory_space<vmem>>, vector<2x128xf32>
      %c0_47 = arith.constant 0 : index
      %c0_48 = arith.constant 0 : index
      %73 = vector.load %arg13[%c0_47, %c0_48] : memref<2x128xf32, #tpu.memory_space<vmem>>, vector<2x128xf32>
      tpu.vector_store %arg13[%c0_47, %c0_48], %72 {strides = array<i32>} : memref<2x128xf32, #tpu.memory_space<vmem>>, vector<2x128xf32>,
    } else {
    }
    return
  }
  func.func @transform_0(%arg0: i32, %arg1: i32) -> (i32, i32, i32) {
    %c0_i32 = arith.constant 0 : i32
    %c0_i32_0 = arith.constant 0 : i32
    return %arg1, %arg0, %c0_i32 : i32, i32, i32
  }
  func.func @transform_1(%arg0: i32, %arg1: i32) -> (i32, i32, i32) {
    %c0_i32 = arith.constant 0 : i32
    %c0_i32_0 = arith.constant 0 : i32
    return %arg1, %arg0, %c0_i32 : i32, i32, i32
  }
  func.func @transform_2(%arg0: i32, %arg1: i32) -> (i32, i32, i32) {
    %c0_i32 = arith.constant 0 : i32
    %c0_i32_0 = arith.constant 0 : i32
    return %arg1, %arg0, %c0_i32 : i32, i32, i32
  }
  func.func @transform_3(%arg0: i32, %arg1: i32) -> (i32, i32) {
    %c0_i32 = arith.constant 0 : i32
    %c0_i32_0 = arith.constant 0 : i32
    %c0_i32_1 = arith.constant 0 : i32
    return %c0_i32, %c0_i32_0 : i32, i32
  }
  func.func @transform_4(%arg0: i32, %arg1: i32) -> (i32, i32) {
    %c0_i32 = arith.constant 0 : i32
    %c0_i32_0 = arith.constant 0 : i32
    %c0_i32_1 = arith.constant 0 : i32
    return %c0_i32, %c0_i32_0 : i32, i32
  }
  func.func @transform_5(%arg0: i32, %arg1: i32) -> (i32, i32) {
    %c0_i32 = arith.constant 0 : i32
    %c0_i32_0 = arith.constant 0 : i32
    %c0_i32_1 = arith.constant 0 : i32
    return %c0_i32, %c0_i32_0 : i32, i32
  }
  func.func @transform_6(%arg0: i32, %arg1: i32) -> (i32, i32) {
    %c0_i32 = arith.constant 0 : i32
    %c0_i32_0 = arith.constant 0 : i32
    %c0_i32_1 = arith.constant 0 : i32
    return %c0_i32, %c0_i32_0 : i32, i32
  }
  func.func @transform_7(%arg0: i32, %arg1: i32) -> (i32, i32) {
    %c0_i32 = arith.constant 0 : i32
    %c0_i32_0 = arith.constant 0 : i32
    return %arg0, %c0_i32 : i32, i32
  }
  func.func @transform_8(%arg0: i32, %arg1: i32) -> (i32, i32) {
    %c0_i32 = arith.constant 0 : i32
    %c0_i32_0 = arith.constant 0 : i32
    return %arg0, %c0_i32 : i32, i32
  }
  func.func @transform_9(%arg0: i32, %arg1: i32) -> (i32, i32, i32) {
    %c0_i32 = arith.constant 0 : i32
    %c0_i32_0 = arith.constant 0 : i32
    return %arg1, %arg0, %c0_i32 : i32, i32, i32
  }
  func.func @transform_10(%arg0: i32, %arg1: i32) -> (i32, i32) {
    %c0_i32 = arith.constant 0 : i32
    %c0_i32_0 = arith.constant 0 : i32
    return %arg0, %c0_i32 : i32, i32
  }
  func.func @transform_11(%arg0: i32, %arg1: i32) -> (i32, i32) {
    %c0_i32 = arith.constant 0 : i32
    %c0_i32_0 = arith.constant 0 : i32
    return %arg0, %c0_i32 : i32, i32
  }
}

</mosaic_0001>

<llo_original>
// kernel: fwd.1
$region0: #{fwd.1}
  #allocation0 [shape = 'u32[]', space=smem, size = 0x4, offset = 0x4, fixed_abs, tag = 'smem constant byte address 0x4 - core index']
  #allocation1 [shape = 'u32[144,128]{1,0:T(1,128)}', space=vmem, size = 0x12000, scoped, tag = 'internal scratch']
  #allocation2 [shape = 'f32[2,128]{1,0:T(2,128)}', space=vmem, size = 0x400, scoped, tag = 'scratch operand']
  #allocation3 [shape = 'f32[2,128]{1,0:T(2,128)}', space=vmem, size = 0x400, scoped, tag = 'scratch operand']
  %s0 = inlined_call_operand.vmem [shape: f32[1,2,16], index: 0, kind: input, shape index: {}]
  %s1 = inlined_call_operand.hbm [shape: f32[1,2,16], index: 1, kind: input, shape index: {}]
  %s2 = inlined_call_operand.hbm [shape: f32[1,2,16], index: 2, kind: input, shape index: {}]
  %s3 = inlined_call_operand.vmem [shape: f32[16,128], index: 3, kind: input, shape index: {}]
  %s4 = inlined_call_operand.hbm [shape: f32[16,128], index: 4, kind: input, shape index: {}]
  %s5 = inlined_call_operand.hbm [shape: f32[16,128], index: 5, kind: input, shape index: {}]
  %s6 = inlined_call_operand.vmem [shape: f32[8,128], index: 6, kind: input, shape index: {}]
  %s7 = inlined_call_operand.vmem [shape: f32[2,128], index: 7, kind: input, shape index: {}, may-alias: {7,10}]
  %s8 = inlined_call_operand.vmem [shape: f32[2,128], index: 8, kind: input, shape index: {}, may-alias: {8,11}]
  %s9 = inlined_call_operand.vmem [shape: f32[1,2,128], index: 9, kind: output, shape index: {0}]
  %s10 = inlined_call_operand.vmem [shape: f32[2,128], index: 10, kind: output, shape index: {1}, may-alias: {7,10}]
  %s11 = inlined_call_operand.vmem [shape: f32[2,128], index: 11, kind: output, shape index: {2}, may-alias: {8,11}]
  %12 = xla_tuple %s9, %s10, %s11
  %s13 = sld [smem:[#allocation0]]
  $region86: #{fwd.1} parent=0
    _
  %s15 = ssub.s32 1, %s13
  %s16 = scalar_select 0, %s15, %s13
  $region1: #{fwd.1} parent=0
    #allocation4 [shape = 'u8[1024]{0}', space=vmem, size = 0x400, scoped, tag = 'input window, operand 1, single buffered']
    #allocation5 [shape = 's32[1]{0}', space=sflag, size = 0x4, scoped, tag = 'scoped memory for fwd.1']
    #allocation6 [shape = 'u8[1024]{0}', space=vmem, size = 0x400, scoped, tag = 'input window, operand 2, single buffered']
    #allocation7 [shape = 's32[1]{0}', space=sflag, size = 0x4, scoped, tag = 'scoped memory for fwd.1']
    #allocation8 [shape = 'u8[8192]{0}', space=vmem, size = 0x2000, scoped, tag = 'input window, operand 4, single buffered']
    #allocation9 [shape = 'u8[8192]{0}', space=vmem, size = 0x2000, scoped, tag = 'input window, operand 5, single buffered']
    #allocation10 [shape = 's32[1]{0}', space=sflag, size = 0x4, scoped, tag = 'scoped memory for fwd.1']
    %17 = vsyncpa [#allocation5], 0
    %18 = vsyncpa [#allocation7], 0
    %19 = vsyncpa [#allocation10], 0
    // Predicated region
    $region2: #{fwd.1} parent=1 // pred_check
      _
    $region3: #{fwd.1} parent=1 // pred_check_branch
      %21 = sbr.rel (0) target = $region5
    $region4: #{fwd.1} parent=1 // pred_region
      _
    $region5: #{fwd.1} parent=1 // pred_fallthru
      _
    // Predicated region
    $region6: #{fwd.1} parent=1 // pred_check
      _
    $region7: #{fwd.1} parent=1 // pred_check_branch
      %23 = sbr.rel (0) target = $region9
    $region8: #{fwd.1} parent=1 // pred_region
      %s25 = ssub.s32 32, 32
      %26 = vsyncadd [#allocation5], %s25
      %s28 = sshll.u32 [#allocation4], 4
      %s29 = int_to_ptr.vmem [resolvable:$true] %s28
      %31 = dma.hbm_to_vmem [thread:$0]  %s1, 32, %s29, [#allocation5]
    $region9: #{fwd.1} parent=1 // pred_fallthru
      _
    // Predicated region
    $region10: #{fwd.1} parent=1 // pred_check
      _
    $region11: #{fwd.1} parent=1 // pred_check_branch
      %33 = sbr.rel (0) target = $region13
    $region12: #{fwd.1} parent=1 // pred_region
      %s35 = ssub.s32 32, 32
      %36 = vsyncadd [#allocation7], %s35
      %s38 = sshll.u32 [#allocation6], 4
      %s39 = int_to_ptr.vmem [resolvable:$true] %s38
      %41 = dma.hbm_to_vmem [thread:$0]  %s2, 32, %s39, [#allocation7]
    $region13: #{fwd.1} parent=1 // pred_fallthru
      _
    // Predicated region
    $region14: #{fwd.1} parent=1 // pred_check
      _
    $region15: #{fwd.1} parent=1 // pred_check_branch
      %43 = sbr.rel (0) target = $region17
    $region16: #{fwd.1} parent=1 // pred_region
      _
    $region17: #{fwd.1} parent=1 // pred_fallthru
      _
    // Predicated region
    $region18: #{fwd.1} parent=1 // pred_check
      _
    $region19: #{fwd.1} parent=1 // pred_check_branch
      %45 = sbr.rel (0) target = $region21
    $region20: #{fwd.1} parent=1 // pred_region
      %s47 = ssub.s32 256, 256
      %48 = vsyncadd [#allocation7], %s47
      %s49 = sshll.u32 [#allocation8], 4
      %s50 = int_to_ptr.vmem [resolvable:$true] %s49
      %55 = dma.hbm_to_vmem [thread:$0]  %s4, 256, %s50, [#allocation7], 128, 128, 8
    $region21: #{fwd.1} parent=1 // pred_fallthru
      _
    // Predicated region
    $region22: #{fwd.1} parent=1 // pred_check
      _
    $region23: #{fwd.1} parent=1 // pred_check_branch
      %57 = sbr.rel (0) target = $region25
    $region24: #{fwd.1} parent=1 // pred_region
      %s59 = ssub.s32 256, 256
      %60 = vsyncadd [#allocation10], %s59
      %s61 = sshll.u32 [#allocation9], 4
      %s62 = int_to_ptr.vmem [resolvable:$true] %s61
      %67 = dma.hbm_to_vmem [thread:$0]  %s5, 256, %s62, [#allocation10], 128, 128, 8
    $region25: #{fwd.1} parent=1 // pred_fallthru
      _
    // Predicated region
    $region26: #{fwd.1} parent=1 // pred_check
      _
    $region27: #{fwd.1} parent=1 // pred_check_branch
      %69 = sbr.rel (0) target = $region29
    $region28: #{fwd.1} parent=1 // pred_region
      _
    $region29: #{fwd.1} parent=1 // pred_fallthru
      _
    // Predicated region
    $region30: #{fwd.1} parent=1 // pred_check
      _
    $region31: #{fwd.1} parent=1 // pred_check_branch
      %71 = sbr.rel (0) target = $region33
    $region32: #{fwd.1} parent=1 // pred_region
      _
    $region33: #{fwd.1} parent=1 // pred_fallthru
      _
    // Predicated region
    $region34: #{fwd.1} parent=1 // pred_check
      _
    $region35: #{fwd.1} parent=1 // pred_check_branch
      %73 = sbr.rel (0) target = $region37
    $region36: #{fwd.1} parent=1 // pred_region
      _
    $region37: #{fwd.1} parent=1 // pred_fallthru
      _
    // Predicated region
    $region38: #{fwd.1} parent=1 // pred_check
      _
    $region39: #{fwd.1} parent=1 // pred_check_branch
      %75 = sbr.rel (0) target = $region41
    $region40: #{fwd.1} parent=1 // pred_region
      %76 = dma.done [#allocation5], 32
    $region41: #{fwd.1} parent=1 // pred_fallthru
      _
    // Predicated region
    $region42: #{fwd.1} parent=1 // pred_check
      _
    $region43: #{fwd.1} parent=1 // pred_check_branch
      %78 = sbr.rel (0) target = $region45
    $region44: #{fwd.1} parent=1 // pred_region
      %79 = dma.done [#allocation7], 32
    $region45: #{fwd.1} parent=1 // pred_fallthru
      _
    // Predicated region
    $region46: #{fwd.1} parent=1 // pred_check
      _
    $region47: #{fwd.1} parent=1 // pred_check_branch
      %81 = sbr.rel (0) target = $region49
    $region48: #{fwd.1} parent=1 // pred_region
      %82 = dma.done [#allocation7], 256
    $region49: #{fwd.1} parent=1 // pred_fallthru
      _
    // Predicated region
    $region50: #{fwd.1} parent=1 // pred_check
      _
    $region51: #{fwd.1} parent=1 // pred_check_branch
      %84 = sbr.rel (0) target = $region53
    $region52: #{fwd.1} parent=1 // pred_region
      %85 = dma.done [#allocation10], 256
    $region53: #{fwd.1} parent=1 // pred_fallthru
      _
    %p86 = scmp.eq.s32.totalorder 0, 0
    // Predicated region
    $region54: #{fwd.1} parent=1 // pred_check
      %p87 = pneg %p86
    $region55: #{fwd.1} parent=1 // pred_check_branch
      %89 = sbr.rel (%p87) target = $region57
    $region56: #{fwd.1} parent=1 // pred_region
      %v90 = vld [vmem:[%s7] sm:$0x3]
      %91 = vst [vmem:[#allocation2] sm:$0x3] %v90
      %v92 = vld [vmem:[%s8] sm:$0x3]
      %93 = vst [vmem:[#allocation3] sm:$0x3] %v92
    $region57: #{fwd.1} parent=1 // pred_fallthru
      _
    %v94 = vld [vmem:[%s0] sm:$0x3]
    %v95 = vld [vmem:[%s3] sm:$0xff]
    %v96 = vld [vmem:[%s3 + $0x8] sm:$0xff]
    %v97 = vld [vmem:[#allocation4] sm:$0x3]
    %v98 = vld [vmem:[#allocation8] sm:$0xff]
    %v99 = vld [vmem:[#allocation8 + $0x8] sm:$0xff]
    %vm100 = vcmask 130048
    %v102 = vsel %vm100, %v97, 0
    %104 = vmatprep.subr.mxu0 0.0
    %105 = vmatpush1.msra.mxu0 %v98
    %106 = vmatprep.subr.mxu0 0.0
    %107 = vmatpush1.msra.mxu0 %v99
    %108 = vmatprep.subr.mxu0 0.0
    %109 = vmatpush1.msra.mxu0 0.0
    %110 = vmatprep.subr.mxu0 0.0
    %111 = vmatpush1.msra.mxu0 0.0
    %112 = vmatprep.subr.mxu0 0.0
    %113 = vmatpush1.msra.mxu0 0.0
    %114 = vmatprep.subr.mxu0 0.0
    %115 = vmatpush1.msra.mxu0 0.0
    %116 = vmatprep.subr.mxu0 0.0
    %117 = vmatpush1.msra.mxu0 0.0
    %118 = vmatprep.subr.mxu0 0.0
    %119 = vmatpush1.msra.mxu0 0.0
    %120 = vmatprep.subr.mxu0 0.0
    %121 = vmatpush1.msra.mxu0 0.0
    %122 = vmatprep.subr.mxu0 0.0
    %123 = vmatpush1.msra.mxu0 0.0
    %124 = vmatprep.subr.mxu0 0.0
    %125 = vmatpush1.msra.mxu0 0.0
    %126 = vmatprep.subr.mxu0 0.0
    %127 = vmatpush1.msra.mxu0 0.0
    %128 = vmatprep.subr.mxu0 0.0
    %129 = vmatpush1.msra.mxu0 0.0
    %130 = vmatprep.subr.mxu0 0.0
    %131 = vmatpush1.msra.mxu0 0.0
    %132 = vmatprep.subr.mxu0 0.0
    %133 = vmatpush1.msra.mxu0 0.0
    %134 = vmatprep.subr.mxu0 0.0
    %135 = vmatpush1.msra.mxu0 0.0
    %136 = vmatprep.subr.mxu0 0.0
    %137 = vmatpush1.msra.mxu0 0.0
    %138 = vmatprep.subr.mxu0 0.0
    %139 = vmatpush1.msra.mxu0 0.0
    %140 = vmatprep.subr.mxu0 0.0
    %141 = vmatpush1.msra.mxu0 0.0
    %142 = vmatprep.subr.mxu0 0.0
    %143 = vmatpush1.msra.mxu0 0.0
    %144 = vmatprep.subr.mxu0 0.0
    %145 = vmatpush1.msra.mxu0 0.0
    %146 = vmatprep.subr.mxu0 0.0
    %147 = vmatpush1.msra.mxu0 0.0
    %148 = vmatprep.subr.mxu0 0.0
    %149 = vmatpush1.msra.mxu0 0.0
    %150 = vmatprep.subr.mxu0 0.0
    %151 = vmatpush1.msra.mxu0 0.0
    %152 = vmatprep.subr.mxu0 0.0
    %153 = vmatpush1.msra.mxu0 0.0
    %154 = vmatprep.subr.mxu0 0.0
    %155 = vmatpush1.msra.mxu0 0.0
    %156 = vmatprep.subr.mxu0 0.0
    %157 = vmatpush1.msra.mxu0 0.0
    %158 = vmatprep.subr.mxu0 0.0
    %159 = vmatpush1.msra.mxu0 0.0
    %160 = vmatprep.subr.mxu0 0.0
    %161 = vmatpush1.msra.mxu0 0.0
    %162 = vmatprep.subr.mxu0 0.0
    %163 = vmatpush1.msra.mxu0 0.0
    %164 = vmatprep.subr.mxu0 0.0
    %165 = vmatpush1.msra.mxu0 0.0
    %166 = vmatprep.subr.mxu0 0.0
    %167 = vmatpush1.msra.mxu0 0.0
    %168 = vmatprep.mubr.f32.mxu0 0.0
    %169 = vmatmul.mubr.f32.gmra.mrb[0].mxu0 %v102
    %v170 = vpop.f32.mrb[0].mxu0
    %v171 = vadd.f32 0.0, %v170
    %v172 = vpop.f32.mrb[0].mxu0
    %173 = vdwg.mxu0
    %v175 = vsel %vm100, %v94, 0
    %177 = vmatprep.subr.mxu0 0.0
    %178 = vmatpush1.msra.mxu0 %v95
    %179 = vmatprep.subr.mxu0 0.0
    %180 = vmatpush1.msra.mxu0 %v96
    %181 = vmatprep.subr.mxu0 0.0
    %182 = vmatpush1.msra.mxu0 0.0
    %183 = vmatprep.subr.mxu0 0.0
    %184 = vmatpush1.msra.mxu0 0.0
    %185 = vmatprep.subr.mxu0 0.0
    %186 = vmatpush1.msra.mxu0 0.0
    %187 = vmatprep.subr.mxu0 0.0
    %188 = vmatpush1.msra.mxu0 0.0
    %189 = vmatprep.subr.mxu0 0.0
    %190 = vmatpush1.msra.mxu0 0.0
    %191 = vmatprep.subr.mxu0 0.0
    %192 = vmatpush1.msra.mxu0 0.0
    %193 = vmatprep.subr.mxu0 0.0
    %194 = vmatpush1.msra.mxu0 0.0
    %195 = vmatprep.subr.mxu0 0.0
    %196 = vmatpush1.msra.mxu0 0.0
    %197 = vmatprep.subr.mxu0 0.0
    %198 = vmatpush1.msra.mxu0 0.0
    %199 = vmatprep.subr.mxu0 0.0
    %200 = vmatpush1.msra.mxu0 0.0
    %201 = vmatprep.subr.mxu0 0.0
    %202 = vmatpush1.msra.mxu0 0.0
    %203 = vmatprep.subr.mxu0 0.0
    %204 = vmatpush1.msra.mxu0 0.0
    %205 = vmatprep.subr.mxu0 0.0
    %206 = vmatpush1.msra.mxu0 0.0
    %207 = vmatprep.subr.mxu0 0.0
    %208 = vmatpush1.msra.mxu0 0.0
    %209 = vmatprep.subr.mxu0 0.0
    %210 = vmatpush1.msra.mxu0 0.0
    %211 = vmatprep.subr.mxu0 0.0
    %212 = vmatpush1.msra.mxu0 0.0
    %213 = vmatprep.subr.mxu0 0.0
    %214 = vmatpush1.msra.mxu0 0.0
    %215 = vmatprep.subr.mxu0 0.0
    %216 = vmatpush1.msra.mxu0 0.0
    %217 = vmatprep.subr.mxu0 0.0
    %218 = vmatpush1.msra.mxu0 0.0
    %219 = vmatprep.subr.mxu0 0.0
    %220 = vmatpush1.msra.mxu0 0.0
    %221 = vmatprep.subr.mxu0 0.0
    %222 = vmatpush1.msra.mxu0 0.0
    %223 = vmatprep.subr.mxu0 0.0
    %224 = vmatpush1.msra.mxu0 0.0
    %225 = vmatprep.subr.mxu0 0.0
    %226 = vmatpush1.msra.mxu0 0.0
    %227 = vmatprep.subr.mxu0 0.0
    %228 = vmatpush1.msra.mxu0 0.0
    %229 = vmatprep.subr.mxu0 0.0
    %230 = vmatpush1.msra.mxu0 0.0
    %231 = vmatprep.subr.mxu0 0.0
    %232 = vmatpush1.msra.mxu0 0.0
    %233 = vmatprep.subr.mxu0 0.0
    %234 = vmatpush1.msra.mxu0 0.0
    %235 = vmatprep.subr.mxu0 0.0
    %236 = vmatpush1.msra.mxu0 0.0
    %237 = vmatprep.subr.mxu0 0.0
    %238 = vmatpush1.msra.mxu0 0.0
    %239 = vmatprep.subr.mxu0 0.0
    %240 = vmatpush1.msra.mxu0 0.0
    %241 = vmatprep.mubr.f32.mxu0 0.0
    %242 = vmatmul.mubr.f32.gmra.mrb[0].mxu0 %v175
    %v243 = vpop.f32.mrb[0].mxu0
    %v244 = vadd.f32 %v171, %v243
    %v245 = vpop.f32.mrb[0].mxu0
    %246 = vdwg.mxu0
    %v247 = vld [vmem:[#allocation6] sm:$0x3]
    %v248 = vld [vmem:[#allocation9] sm:$0xff]
    %v249 = vld [vmem:[#allocation9 + $0x8] sm:$0xff]
    %v251 = vsel %vm100, %v247, 0
    %253 = vmatprep.subr.mxu0 0.0
    %254 = vmatpush1.msra.mxu0 %v248
    %255 = vmatprep.subr.mxu0 0.0
    %256 = vmatpush1.msra.mxu0 %v249
    %257 = vmatprep.subr.mxu0 0.0
    %258 = vmatpush1.msra.mxu0 0.0
    %259 = vmatprep.subr.mxu0 0.0
    %260 = vmatpush1.msra.mxu0 0.0
    %261 = vmatprep.subr.mxu0 0.0
    %262 = vmatpush1.msra.mxu0 0.0
    %263 = vmatprep.subr.mxu0 0.0
    %264 = vmatpush1.msra.mxu0 0.0
    %265 = vmatprep.subr.mxu0 0.0
    %266 = vmatpush1.msra.mxu0 0.0
    %267 = vmatprep.subr.mxu0 0.0
    %268 = vmatpush1.msra.mxu0 0.0
    %269 = vmatprep.subr.mxu0 0.0
    %270 = vmatpush1.msra.mxu0 0.0
    %271 = vmatprep.subr.mxu0 0.0
    %272 = vmatpush1.msra.mxu0 0.0
    %273 = vmatprep.subr.mxu0 0.0
    %274 = vmatpush1.msra.mxu0 0.0
    %275 = vmatprep.subr.mxu0 0.0
    %276 = vmatpush1.msra.mxu0 0.0
    %277 = vmatprep.subr.mxu0 0.0
    %278 = vmatpush1.msra.mxu0 0.0
    %279 = vmatprep.subr.mxu0 0.0
    %280 = vmatpush1.msra.mxu0 0.0
    %281 = vmatprep.subr.mxu0 0.0
    %282 = vmatpush1.msra.mxu0 0.0
    %283 = vmatprep.subr.mxu0 0.0
    %284 = vmatpush1.msra.mxu0 0.0
    %285 = vmatprep.subr.mxu0 0.0
    %286 = vmatpush1.msra.mxu0 0.0
    %287 = vmatprep.subr.mxu0 0.0
    %288 = vmatpush1.msra.mxu0 0.0
    %289 = vmatprep.subr.mxu0 0.0
    %290 = vmatpush1.msra.mxu0 0.0
    %291 = vmatprep.subr.mxu0 0.0
    %292 = vmatpush1.msra.mxu0 0.0
    %293 = vmatprep.subr.mxu0 0.0
    %294 = vmatpush1.msra.mxu0 0.0
    %295 = vmatprep.subr.mxu0 0.0
    %296 = vmatpush1.msra.mxu0 0.0
    %297 = vmatprep.subr.mxu0 0.0
    %298 = vmatpush1.msra.mxu0 0.0
    %299 = vmatprep.subr.mxu0 0.0
    %300 = vmatpush1.msra.mxu0 0.0
    %301 = vmatprep.subr.mxu0 0.0
    %302 = vmatpush1.msra.mxu0 0.0
    %303 = vmatprep.subr.mxu0 0.0
    %304 = vmatpush1.msra.mxu0 0.0
    %305 = vmatprep.subr.mxu0 0.0
    %306 = vmatpush1.msra.mxu0 0.0
    %307 = vmatprep.subr.mxu0 0.0
    %308 = vmatpush1.msra.mxu0 0.0
    %309 = vmatprep.subr.mxu0 0.0
    %310 = vmatpush1.msra.mxu0 0.0
    %311 = vmatprep.subr.mxu0 0.0
    %312 = vmatpush1.msra.mxu0 0.0
    %313 = vmatprep.subr.mxu0 0.0
    %314 = vmatpush1.msra.mxu0 0.0
    %315 = vmatprep.subr.mxu0 0.0
    %316 = vmatpush1.msra.mxu0 0.0
    %317 = vmatprep.mubr.f32.mxu0 0.0
    %318 = vmatmul.mubr.f32.gmra.mrb[0].mxu0 %v251
    %v319 = vpop.f32.mrb[0].mxu0
    %v320 = vadd.f32 0.0, %v319
    %v321 = vpop.f32.mrb[0].mxu0
    %322 = vdwg.mxu0
    %v323 = vadd.f32 %v244, %v320
    %v324 = vld [vmem:[%s6] sm:$0x1]
    %v325 = vld [vmem:[%s6 + $0x1] sm:$0x1]
    %v326 = vld [vmem:[%s6 + $0x2] sm:$0x1]
    %v327 = vld [vmem:[%s6 + $0x3] sm:$0x1]
    %v328 = vld [vmem:[%s6 + $0x4] sm:$0x1]
    %v329 = vld [vmem:[#allocation2] sm:$0x3]
    %v330 = vld [vmem:[#allocation3] sm:$0x3]
    %v331 = vmul.f32 %v329, 0.04
    %v332 = vadd.f32 %v331, 5.0
    %v333 = vmul.f32 %v329, %v332
    %v334 = vadd.f32 %v333, 140.0
    %v335 = vsub.f32 %v334, %v330
    %v336 = vadd.f32 %v329, %v335
    %v337 = vadd.f32 %v336, %v323
    %v338 = vlaneseq
    %v339 = vshrl.u32 %v338, 7
    %v340 = vsub.s32 0, %v339
    %v341 = vrot.slane %v324, %v340
    %v342 = vmul.f32 %v341, %v337
    %v343 = vadd.f32 %v330, %v342
    %v344 = vlaneseq
    %v345 = vshrl.u32 %v344, 7
    %v346 = vsub.s32 0, %v345
    %v347 = vrot.slane %v325, %v346
    %v348 = vmul.f32 %v347, %v330
    %v349 = vsub.f32 %v343, %v348
    %v350 = vlaneseq
    %v351 = vshrl.u32 %v350, 7
    %v352 = vsub.s32 0, %v351
    %v353 = vrot.slane %v328, %v352
    %vm354 = vcmp.gt.f32.partialorder %v337, %v353
    %v355 = vsel %vm354, 1, 0
    %v356 = vcvt.s32.f32 %v355
    %v357 = vlaneseq
    %v358 = vshrl.u32 %v357, 7
    %v359 = vsub.s32 0, %v358
    %v360 = vrot.slane %v326, %v359
    %v361 = vsel %vm354, %v360, %v337
    %362 = vst [vmem:[#allocation2] sm:$0x3] %v361
    %v363 = vlaneseq
    %v364 = vshrl.u32 %v363, 7
    %v365 = vsub.s32 0, %v364
    %v366 = vrot.slane %v327, %v365
    %v367 = vadd.f32 %v349, %v366
    %v368 = vsel %vm354, %v367, %v349
    %369 = vst [vmem:[#allocation3] sm:$0x3] %v368
    %v370 = vlaneseq
    %v371 = vand.u32 %v370, 127
    %372 = vrot.lane.b32.xlu0 %v356, 96
    %v373 = vpop.permute.xlu0 %372
    %vm374 = vcmp.lt.s32.totalorder %v371, 32
    %vm375 = vcmp.lt.s32.totalorder %v371, 64
    %v376 = vadd.f32 %v356, %v373
    %v377 = vsel %vm375, %v376, 0.0
    %v378 = vsel %vm374, %v356, %v377
    %379 = vst [vmem:[%s9] sm:$0x3] %v378
    // Predicated region
    $region58: #{fwd.1} parent=1 // pred_check
      %p380 = pneg %p86
    $region59: #{fwd.1} parent=1 // pred_check_branch
      %382 = sbr.rel (%p380) target = $region61
    $region60: #{fwd.1} parent=1 // pred_region
      %v383 = vld [vmem:[#allocation2] sm:$0x3]
      %384 = vst [vmem:[%s10] sm:$0x3] %v383
      %v385 = vld [vmem:[#allocation3] sm:$0x3]
      %386 = vst [vmem:[%s11] sm:$0x3] %v385
    $region61: #{fwd.1} parent=1 // pred_fallthru
      _
    // Predicated region
    $region62: #{fwd.1} parent=1 // pred_check
      _
    $region63: #{fwd.1} parent=1 // pred_check_branch
      %388 = sbr.rel (0) target = $region65
    $region64: #{fwd.1} parent=1 // pred_region
      _
    $region65: #{fwd.1} parent=1 // pred_fallthru
      _
    // Predicated region
    $region66: #{fwd.1} parent=1 // pred_check
      _
    $region67: #{fwd.1} parent=1 // pred_check_branch
      %390 = sbr.rel (0) target = $region69
    $region68: #{fwd.1} parent=1 // pred_region
      _
    $region69: #{fwd.1} parent=1 // pred_fallthru
      _
    // Predicated region
    $region70: #{fwd.1} parent=1 // pred_check
      _
    $region71: #{fwd.1} parent=1 // pred_check_branch
      %392 = sbr.rel (0) target = $region73
    $region72: #{fwd.1} parent=1 // pred_region
      _
    $region73: #{fwd.1} parent=1 // pred_fallthru
      _
    // Predicated region
    $region74: #{fwd.1} parent=1 // pred_check
      _
    $region75: #{fwd.1} parent=1 // pred_check_branch
      %394 = sbr.rel (0) target = $region77
    $region76: #{fwd.1} parent=1 // pred_region
      _
    $region77: #{fwd.1} parent=1 // pred_fallthru
      _
    // Predicated region
    $region78: #{fwd.1} parent=1 // pred_check
      _
    $region79: #{fwd.1} parent=1 // pred_check_branch
      %396 = sbr.rel (0) target = $region81
    $region80: #{fwd.1} parent=1 // pred_region
      _
    $region81: #{fwd.1} parent=1 // pred_fallthru
      _
    // Predicated region
    $region82: #{fwd.1} parent=1 // pred_check
      _
    $region83: #{fwd.1} parent=1 // pred_check_branch
      %398 = sbr.rel (0) target = $region85
    $region84: #{fwd.1} parent=1 // pred_region
      _
    $region85: #{fwd.1} parent=1 // pred_fallthru
      _
    %399 = vsyncpa [#allocation5], 1
    %400 = vsyncpa [#allocation7], 1
    %401 = vsyncpa [#allocation10], 1

</llo_original>
